<compile_context>
chip_gen: v5e
topology: v5e:2x2
jax: 0.10.0
libtpu: 0.0.40
codegen_flags: <defaults>
</compile_context>

<pallas_src>
import jax
import jax.numpy as jnp
from jax.experimental import pallas as pl
from jax.experimental.pallas import tpu as pltpu


# ---------------------------------------------------------------------------
# Model hyper-parameters (Tree.num_sem is a class constant in the original repo)
# ---------------------------------------------------------------------------
NUM_SEM = 8          # Tree.num_sem
FEATURE_SIZE = 24    # feature_size
HIDDEN_SIZE = 32     # hidden_size
F_IN = FEATURE_SIZE + NUM_SEM   # mlp1 input dim = 32

LANE = 128           # TPU lane width
SUBLANE = 8          # TPU sublane count


def _round_up(x, m):
    return (x + m - 1) // m * m


def _encoder_kernel(cf_ref, ce_ref, w1bd_ref, b1w_ref, emask_ref, w2_ref, b2_ref,
                    out_ref):
    """One batch tile of: mlp1 -> relu -> mask -> max over children -> mlp2 -> relu.

    cf_ref   : (TB, M*F_in)   lane-dense child features (child m in cols m*F_in:...)
    ce_ref   : (TB, M)        child-exists mask (0/1)
    w1bd_ref : (M*F_in, M*H)  block-diagonal kron(I_M, W1)
    b1w_ref  : (1, M*H)       tile(b1, M)
    emask_ref: (M, M*H)       kron(I_M, ones(1, H)) -- mask lane-group expansion
    w2_ref   : (H, F_out)     b2_ref : (1, F_out)
    out_ref  : (TB, F_out)
    """
    num_childs = ce_ref.shape[1]
    hidden = w2_ref.shape[0]

    # Fused mlp1 for all M children: one K = M*F_in matmul on the MXU.
    h = jnp.dot(cf_ref[...], w1bd_ref[...], preferred_element_type=jnp.float32)
    h = jnp.maximum(h + b1w_ref[...], 0.0)

    # Widen the (TB, M) mask to (TB, M*H) lane groups (exact 0/1 values).
    mask = jnp.dot(ce_ref[...], emask_ref[...], preferred_element_type=jnp.float32)
    h = h * mask

    # Symmetric max over children: lane-group reduction.
    if num_childs & (num_childs - 1) == 0:
        # Power-of-two butterfly: log2(M) rolls on the XLU + VPU maxima.
        shift = (num_childs // 2) * hidden
        while shift >= hidden:
            h = jnp.maximum(h, pltpu.roll(h, shift=shift, axis=1))
            shift //= 2
        pooled = h[:, :hidden]
    else:
        pooled = h[:, :hidden]
        for m in range(1, num_childs):
            pooled = jnp.maximum(pooled, h[:, m * hidden:(m + 1) * hidden])

    out = jnp.dot(pooled, w2_ref[...], preferred_element_type=jnp.float32)
    out_ref[...] = jnp.maximum(out + b2_ref[...], 0.0)


def symmetric_child_encoder(child_feats, child_exists, w1, b1, w2, b2, *, tb=2048):
    """child_feats: (B, M, F_in) f32; child_exists: (B*M, 1) f32 (0/1 mask)."""
    B, M, F_in = child_feats.shape
    H = w1.shape[1]
    F_out = w2.shape[1]

    # ---- batch tiling ----
    b_rounded = _round_up(B, SUBLANE)
    tb_eff = min(tb, b_rounded)
    # Prefer >= 2 grid steps so both v7x TensorCores get work (megacore split).
    if tb_eff == b_rounded and b_rounded >= 2 * SUBLANE:
        tb_eff = _round_up(b_rounded // 2, SUBLANE)
    B_pad = _round_up(B, tb_eff)
    n_steps = B_pad // tb_eff

    # ---- wrapper-side layout (all FREE reshapes of contiguous arrays) ----
    cf = child_feats.astype(jnp.float32).reshape(B, M * F_in)      # (B, M*F_in)
    ce = child_exists.astype(jnp.float32).reshape(B, M)            # (B, M)
    if B_pad != B:
        cf = jnp.pad(cf, ((0, B_pad - B), (0, 0)))
        ce = jnp.pad(ce, ((0, B_pad - B), (0, 0)))

    # Tiny constant operands (resident in VMEM across the whole grid).
    w1f = w1.astype(jnp.float32)
    w1bd = jnp.kron(jnp.eye(M, dtype=jnp.float32), w1f)            # (M*F_in, M*H)
    b1w = jnp.tile(b1.astype(jnp.float32), (1, M))                 # (1, M*H)
    emask = jnp.kron(jnp.eye(M, dtype=jnp.float32),
                     jnp.ones((1, H), jnp.float32))                # (M, M*H)
    w2f = w2.astype(jnp.float32)
    b2f = b2.astype(jnp.float32)

    itemsize = 4
    cost = pl.CostEstimate(
        flops=2 * B_pad * (M * F_in) * (M * H)     # fused mlp1
        + 2 * B_pad * M * (M * H)                  # mask expansion
        + 2 * B_pad * H * F_out,                   # mlp2
        transcendentals=0,
        bytes_accessed=(cf.size + ce.size + w1bd.size + b1w.size + emask.size
                        + w2f.size + b2f.size + B_pad * F_out) * itemsize,
    )

    out = pl.pallas_call(
        _encoder_kernel,
        out_shape=jax.ShapeDtypeStruct((B_pad, F_out), jnp.float32),
        grid_spec=pltpu.PrefetchScalarGridSpec(
            num_scalar_prefetch=0,
            grid=(n_steps,),
            in_specs=[
                pl.BlockSpec((tb_eff, M * F_in), lambda i: (i, 0)),  # activations
                pl.BlockSpec((tb_eff, M),        lambda i: (i, 0)),  # mask
                pl.BlockSpec((M * F_in, M * H),  lambda i: (0, 0)),  # resident weights
                pl.BlockSpec((1, M * H),         lambda i: (0, 0)),
                pl.BlockSpec((M, M * H),         lambda i: (0, 0)),
                pl.BlockSpec((H, F_out),         lambda i: (0, 0)),
                pl.BlockSpec((1, F_out),         lambda i: (0, 0)),
            ],
            out_specs=pl.BlockSpec((tb_eff, F_out), lambda i: (i, 0)),
        ),
        compiler_params=pltpu.CompilerParams(
            dimension_semantics=("parallel",),      # shard batch tiles across TCs
            vmem_limit_bytes=32 * 1024 * 1024,      # lift v5e's 16 MiB scoped default
        ),
        cost_estimate=cost,
    )(cf, ce, w1bd, b1w, emask, w2f, b2f)

    return out[:B]


def _reference(child_feats, child_exists, w1, b1, w2, b2):
    """Pure-JAX reference mirroring the PyTorch forward."""
    B, M, F_in = child_feats.shape
    feat = jax.nn.relu(child_feats.reshape(B * M, F_in) @ w1 + b1[0])
    x = feat * child_exists
    x = jnp.max(x.reshape(B, M, -1), axis=1)
    return jax.nn.relu(x @ w2 + b2[0])


if __name__ == "__main__":
    key = jax.random.PRNGKey(0)
    k_cf, k_ce, k_w1, k_b1, k_w2, k_b2 = jax.random.split(key, 6)

    B = 2          # batch (tree nodes)
    M = 8          # max_childs

    # Inputs
    child_feats = jax.random.normal(k_cf, (B, M, F_IN), dtype=jnp.float32)
    # child_exists: 0/1 mask, shaped (B*M, 1) as in the PyTorch module
    child_exists = (jax.random.uniform(k_ce, (B * M, 1)) > 0.3).astype(jnp.float32)

    # Deterministic parameters (Linear: weight (in, out), bias (1, out))
    w1 = jax.random.normal(k_w1, (F_IN, HIDDEN_SIZE), dtype=jnp.float32) * 0.1
    b1 = jax.random.normal(k_b1, (1, HIDDEN_SIZE), dtype=jnp.float32) * 0.1
    w2 = jax.random.normal(k_w2, (HIDDEN_SIZE, FEATURE_SIZE), dtype=jnp.float32) * 0.1
    b2 = jax.random.normal(k_b2, (1, FEATURE_SIZE), dtype=jnp.float32) * 0.1

    out = symmetric_child_encoder(child_feats, child_exists, w1, b1, w2, b2)
    out = jax.block_until_ready(out)

    ref = _reference(child_feats, child_exists, w1, b1, w2, b2)
    assert out.shape == (B, FEATURE_SIZE)
    assert jnp.allclose(out, ref, atol=1e-5, rtol=1e-5), "mismatch vs reference"

    print("KERNEL_OK")
</pallas_src>

<mosaic_0001>
module attributes {stable_mosaic.version = 11 : i64} {
  func.func @_encoder_kernel(%arg0: i32, %arg1: memref<8x256xf32, #tpu.memory_space<vmem>>, %arg2: memref<8x8xf32, #tpu.memory_space<vmem>>, %arg3: memref<256x256xf32, #tpu.memory_space<vmem>>, %arg4: memref<1x256xf32, #tpu.memory_space<vmem>>, %arg5: memref<8x256xf32, #tpu.memory_space<vmem>>, %arg6: memref<32x24xf32, #tpu.memory_space<vmem>>, %arg7: memref<1x24xf32, #tpu.memory_space<vmem>>, %arg8: memref<8x24xf32, #tpu.memory_space<vmem>>) attributes {dimension_semantics = [#tpu.dimension_semantics<parallel>], iteration_bounds = array<i64: 1>, scalar_prefetch = 0 : i64, scratch_operands = 0 : i64, tpu.core_type = #tpu.core_type<tc>, window_params = [{transform_indices = @transform_0, window_bounds = array<i64: 8, 256>}, {transform_indices = @transform_1, window_bounds = array<i64: 8, 8>}, {pipeline_mode = #tpu.pipeline_mode<synchronous>, transform_indices = @transform_2, window_bounds = array<i64: 256, 256>}, {pipeline_mode = #tpu.pipeline_mode<synchronous>, transform_indices = @transform_3, window_bounds = array<i64: 1, 256>}, {pipeline_mode = #tpu.pipeline_mode<synchronous>, transform_indices = @transform_4, window_bounds = array<i64: 8, 256>}, {pipeline_mode = #tpu.pipeline_mode<synchronous>, transform_indices = @transform_5, window_bounds = array<i64: 32, 24>}, {pipeline_mode = #tpu.pipeline_mode<synchronous>, transform_indices = @transform_6, window_bounds = array<i64: 1, 24>}, {transform_indices = @transform_7, window_bounds = array<i64: 8, 24>}]} {
    %c0 = arith.constant 0 : index
    %c0_0 = arith.constant 0 : index
    %0 = vector.load %arg1[%c0, %c0_0] : memref<8x256xf32, #tpu.memory_space<vmem>>, vector<8x256xf32>
    %c0_1 = arith.constant 0 : index
    %c0_2 = arith.constant 0 : index
    %1 = vector.load %arg3[%c0_1, %c0_2] : memref<256x256xf32, #tpu.memory_space<vmem>>, vector<256x256xf32>
    %cst = arith.constant dense<0.000000e+00> : vector<8x256xf32>
    %2 = tpu.matmul %0, %1, %cst {dimension_numbers = #tpu.dot_dimension_numbers<[1], [0], [0], [1], [0, 0, 1, 1], [], []>} : vector<8x256xf32>, vector<256x256xf32>, vector<8x256xf32> -> vector<8x256xf32>
    %c0_3 = arith.constant 0 : index
    %c0_4 = arith.constant 0 : index
    %3 = vector.load %arg4[%c0_3, %c0_4] : memref<1x256xf32, #tpu.memory_space<vmem>>, vector<1x256xf32>
    %4 = vector.broadcast %3 : vector<1x256xf32> to vector<8x256xf32>
    %5 = arith.addf %2, %4 : vector<8x256xf32>
    %cst_5 = arith.constant 0.000000e+00 : f32
    %6 = vector.broadcast %cst_5 : f32 to vector<8x256xf32>
    %7 = arith.maximumf %5, %6 : vector<8x256xf32>
    %c0_6 = arith.constant 0 : index
    %c0_7 = arith.constant 0 : index
    %8 = vector.load %arg2[%c0_6, %c0_7] : memref<8x8xf32, #tpu.memory_space<vmem>>, vector<8x8xf32>
    %c0_8 = arith.constant 0 : index
    %c0_9 = arith.constant 0 : index
    %9 = vector.load %arg5[%c0_8, %c0_9] : memref<8x256xf32, #tpu.memory_space<vmem>>, vector<8x256xf32>
    %cst_10 = arith.constant dense<0.000000e+00> : vector<8x256xf32>
    %10 = tpu.matmul %8, %9, %cst_10 {dimension_numbers = #tpu.dot_dimension_numbers<[1], [0], [0], [1], [0, 0, 1, 1], [], []>} : vector<8x8xf32>, vector<8x256xf32>, vector<8x256xf32> -> vector<8x256xf32>
    %11 = arith.mulf %7, %10 : vector<8x256xf32>
    %c128_i32 = arith.constant 128 : i32
    %12 = tpu.dynamic_rotate %11 by %c128_i32 dim 1 : vector<8x256xf32>, i32 -> vector<8x256xf32>
    %13 = arith.maximumf %11, %12 : vector<8x256xf32>
    %c64_i32 = arith.constant 64 : i32
    %14 = tpu.dynamic_rotate %13 by %c64_i32 dim 1 : vector<8x256xf32>, i32 -> vector<8x256xf32>
    %15 = arith.maximumf %13, %14 : vector<8x256xf32>
    %c32_i32 = arith.constant 32 : i32
    %16 = tpu.dynamic_rotate %15 by %c32_i32 dim 1 : vector<8x256xf32>, i32 -> vector<8x256xf32>
    %17 = arith.maximumf %15, %16 : vector<8x256xf32>
    %18 = vector.extract_strided_slice %17 {offsets = [0, 0], sizes = [8, 32], strides = [1, 1]} : vector<8x256xf32> to vector<8x32xf32>
    %c0_11 = arith.constant 0 : index
    %c0_12 = arith.constant 0 : index
    %19 = vector.load %arg6[%c0_11, %c0_12] : memref<32x24xf32, #tpu.memory_space<vmem>>, vector<32x24xf32>
    %cst_13 = arith.constant dense<0.000000e+00> : vector<8x24xf32>
    %20 = tpu.matmul %18, %19, %cst_13 {dimension_numbers = #tpu.dot_dimension_numbers<[1], [0], [0], [1], [0, 0, 1, 1], [], []>} : vector<8x32xf32>, vector<32x24xf32>, vector<8x24xf32> -> vector<8x24xf32>
    %c0_14 = arith.constant 0 : index
    %c0_15 = arith.constant 0 : index
    %21 = vector.load %arg7[%c0_14, %c0_15] : memref<1x24xf32, #tpu.memory_space<vmem>>, vector<1x24xf32>
    %22 = vector.broadcast %21 : vector<1x24xf32> to vector<8x24xf32>
    %23 = arith.addf %20, %22 : vector<8x24xf32>
    %cst_16 = arith.constant 0.000000e+00 : f32
    %24 = vector.broadcast %cst_16 : f32 to vector<8x24xf32>
    %25 = arith.maximumf %23, %24 : vector<8x24xf32>
    %c0_17 = arith.constant 0 : index
    %c0_18 = arith.constant 0 : index
    %26 = vector.load %arg8[%c0_17, %c0_18] : memref<8x24xf32, #tpu.memory_space<vmem>>, vector<8x24xf32>
    tpu.vector_store %arg8[%c0_17, %c0_18], %25 {strides = array<i32>} : memref<8x24xf32, #tpu.memory_space<vmem>>, vector<8x24xf32>,
    return
  }
  func.func @transform_0(%arg0: i32) -> (i32, i32) {
    %c0_i32 = arith.constant 0 : i32
    %c0_i32_0 = arith.constant 0 : i32
    return %arg0, %c0_i32 : i32, i32
  }
  func.func @transform_1(%arg0: i32) -> (i32, i32) {
    %c0_i32 = arith.constant 0 : i32
    %c0_i32_0 = arith.constant 0 : i32
    return %arg0, %c0_i32 : i32, i32
  }
  func.func @transform_2(%arg0: i32) -> (i32, i32) {
    %c0_i32 = arith.constant 0 : i32
    %c0_i32_0 = arith.constant 0 : i32
    %c0_i32_1 = arith.constant 0 : i32
    return %c0_i32, %c0_i32_0 : i32, i32
  }
  func.func @transform_3(%arg0: i32) -> (i32, i32) {
    %c0_i32 = arith.constant 0 : i32
    %c0_i32_0 = arith.constant 0 : i32
    %c0_i32_1 = arith.constant 0 : i32
    return %c0_i32, %c0_i32_0 : i32, i32
  }
  func.func @transform_4(%arg0: i32) -> (i32, i32) {
    %c0_i32 = arith.constant 0 : i32
    %c0_i32_0 = arith.constant 0 : i32
    %c0_i32_1 = arith.constant 0 : i32
    return %c0_i32, %c0_i32_0 : i32, i32
  }
  func.func @transform_5(%arg0: i32) -> (i32, i32) {
    %c0_i32 = arith.constant 0 : i32
    %c0_i32_0 = arith.constant 0 : i32
    %c0_i32_1 = arith.constant 0 : i32
    return %c0_i32, %c0_i32_0 : i32, i32
  }
  func.func @transform_6(%arg0: i32) -> (i32, i32) {
    %c0_i32 = arith.constant 0 : i32
    %c0_i32_0 = arith.constant 0 : i32
    %c0_i32_1 = arith.constant 0 : i32
    return %c0_i32, %c0_i32_0 : i32, i32
  }
  func.func @transform_7(%arg0: i32) -> (i32, i32) {
    %c0_i32 = arith.constant 0 : i32
    %c0_i32_0 = arith.constant 0 : i32
    return %arg0, %c0_i32 : i32, i32
  }
}

</mosaic_0001>

<llo_original>
// kernel: tpu_custom_call.1
$region0: #{tpu_custom_call.1}
  #allocation0 [shape = 'u32[]', space=smem, size = 0x4, offset = 0x4, fixed_abs, tag = 'smem constant byte address 0x4 - core index']
  #allocation1 [shape = 'u32[72,128]{1,0:T(1,128)}', space=vmem, size = 0x9000, scoped, tag = 'internal scratch']
  %s0 = inlined_call_operand.vmem [shape: f32[8,256], index: 0, kind: input, shape index: {}]
  %s1 = inlined_call_operand.vmem [shape: f32[8,8], index: 1, kind: input, shape index: {}]
  %s2 = inlined_call_operand.hbm [shape: f32[256,256], index: 2, kind: input, shape index: {}]
  %s3 = inlined_call_operand.vmem [shape: f32[1,256], index: 3, kind: input, shape index: {}]
  %s4 = inlined_call_operand.vmem [shape: f32[8,256], index: 4, kind: input, shape index: {}]
  %s5 = inlined_call_operand.vmem [shape: f32[32,24], index: 5, kind: input, shape index: {}]
  %s6 = inlined_call_operand.vmem [shape: f32[1,24], index: 6, kind: input, shape index: {}]
  %s7 = inlined_call_operand.hbm [shape: f32[8,24], index: 7, kind: output, shape index: {}]
  %s8 = sld [smem:[#allocation0]]
  $region42: #{tpu_custom_call.1} parent=0
    _
  %s10 = ssub.s32 1, %s8
  %s11 = scalar_select 0, %s10, %s8
  $region1: #{tpu_custom_call.1} parent=0
    #allocation2 [shape = 'u8[262144]{0}', space=vmem, size = 0x40000, scoped, tag = 'input window, operand 2, single buffered']
    #allocation3 [shape = 's32[1]{0}', space=sflag, size = 0x4, scoped, tag = 'scoped memory for tpu_custom_call.1']
    #allocation4 [shape = 's32[1]{0}', space=sflag, size = 0x4, scoped, tag = 'scoped memory for tpu_custom_call.1']
    #allocation5 [shape = 'u8[4096]{0}', space=vmem, size = 0x1000, scoped, tag = 'output window, operand 0, single buffered']
    %12 = vsyncpa [#allocation3], 0
    %13 = vsyncpa [#allocation4], 0
    // Predicated region
    $region2: #{tpu_custom_call.1} parent=1 // pred_check
      _
    $region3: #{tpu_custom_call.1} parent=1 // pred_check_branch
      %15 = sbr.rel (0) target = $region5
    $region4: #{tpu_custom_call.1} parent=1 // pred_region
      _
    $region5: #{tpu_custom_call.1} parent=1 // pred_fallthru
      _
    // Predicated region
    $region6: #{tpu_custom_call.1} parent=1 // pred_check
      _
    $region7: #{tpu_custom_call.1} parent=1 // pred_check_branch
      %17 = sbr.rel (0) target = $region9
    $region8: #{tpu_custom_call.1} parent=1 // pred_region
      _
    $region9: #{tpu_custom_call.1} parent=1 // pred_fallthru
      _
    // Predicated region
    $region10: #{tpu_custom_call.1} parent=1 // pred_check
      _
    $region11: #{tpu_custom_call.1} parent=1 // pred_check_branch
      %19 = sbr.rel (0) target = $region13
    $region12: #{tpu_custom_call.1} parent=1 // pred_region
      %21 = vsyncadd [#allocation3], 0
      %s22 = sshll.u32 %s2, 4
      %s23 = int_to_ptr.hbm [resolvable:$true] %s22
      %s24 = sshll.u32 [#allocation2], 4
      %s25 = int_to_ptr.vmem [resolvable:$true] %s24
      %30 = dma.hbm_to_vmem [thread:$0]  %s23, 8192, %s25, [#allocation3], 256, 256, 16
    $region13: #{tpu_custom_call.1} parent=1 // pred_fallthru
      _
    // Predicated region
    $region14: #{tpu_custom_call.1} parent=1 // pred_check
      _
    $region15: #{tpu_custom_call.1} parent=1 // pred_check_branch
      %32 = sbr.rel (0) target = $region17
    $region16: #{tpu_custom_call.1} parent=1 // pred_region
      _
    $region17: #{tpu_custom_call.1} parent=1 // pred_fallthru
      _
    // Predicated region
    $region18: #{tpu_custom_call.1} parent=1 // pred_check
      _
    $region19: #{tpu_custom_call.1} parent=1 // pred_check_branch
      %34 = sbr.rel (0) target = $region21
    $region20: #{tpu_custom_call.1} parent=1 // pred_region
      _
    $region21: #{tpu_custom_call.1} parent=1 // pred_fallthru
      _
    // Predicated region
    $region22: #{tpu_custom_call.1} parent=1 // pred_check
      _
    $region23: #{tpu_custom_call.1} parent=1 // pred_check_branch
      %36 = sbr.rel (0) target = $region25
    $region24: #{tpu_custom_call.1} parent=1 // pred_region
      _
    $region25: #{tpu_custom_call.1} parent=1 // pred_fallthru
      _
    // Predicated region
    $region26: #{tpu_custom_call.1} parent=1 // pred_check
      _
    $region27: #{tpu_custom_call.1} parent=1 // pred_check_branch
      %38 = sbr.rel (0) target = $region29
    $region28: #{tpu_custom_call.1} parent=1 // pred_region
      _
    $region29: #{tpu_custom_call.1} parent=1 // pred_fallthru
      _
    // Predicated region
    $region30: #{tpu_custom_call.1} parent=1 // pred_check
      _
    $region31: #{tpu_custom_call.1} parent=1 // pred_check_branch
      %40 = sbr.rel (0) target = $region33
    $region32: #{tpu_custom_call.1} parent=1 // pred_region
      %42 = dma.done [#allocation3], 8192
    $region33: #{tpu_custom_call.1} parent=1 // pred_fallthru
      _
    %v43 = vld [vmem:[%s0] sm:$0xff]
    %v44 = vld [vmem:[%s0 + $0x8] sm:$0xff]
    %v45 = vld [vmem:[#allocation2] sm:$0xff]
    %v46 = vld [vmem:[#allocation2 + $0x8] sm:$0xff]
    %v47 = vld [vmem:[#allocation2 + $0x10] sm:$0xff]
    %v48 = vld [vmem:[#allocation2 + $0x18] sm:$0xff]
    %v49 = vld [vmem:[#allocation2 + $0x20] sm:$0xff]
    %v50 = vld [vmem:[#allocation2 + $0x28] sm:$0xff]
    %v51 = vld [vmem:[#allocation2 + $0x30] sm:$0xff]
    %v52 = vld [vmem:[#allocation2 + $0x38] sm:$0xff]
    %v53 = vld [vmem:[#allocation2 + $0x40] sm:$0xff]
    %v54 = vld [vmem:[#allocation2 + $0x48] sm:$0xff]
    %v55 = vld [vmem:[#allocation2 + $0x50] sm:$0xff]
    %v56 = vld [vmem:[#allocation2 + $0x58] sm:$0xff]
    %v57 = vld [vmem:[#allocation2 + $0x60] sm:$0xff]
    %v58 = vld [vmem:[#allocation2 + $0x68] sm:$0xff]
    %v59 = vld [vmem:[#allocation2 + $0x70] sm:$0xff]
    %v60 = vld [vmem:[#allocation2 + $0x78] sm:$0xff]
    %v61 = vld [vmem:[#allocation2 + $0x80] sm:$0xff]
    %v62 = vld [vmem:[#allocation2 + $0x88] sm:$0xff]
    %v63 = vld [vmem:[#allocation2 + $0x90] sm:$0xff]
    %v64 = vld [vmem:[#allocation2 + $0x98] sm:$0xff]
    %v65 = vld [vmem:[#allocation2 + $0xa0] sm:$0xff]
    %v66 = vld [vmem:[#allocation2 + $0xa8] sm:$0xff]
    %v67 = vld [vmem:[#allocation2 + $0xb0] sm:$0xff]
    %v68 = vld [vmem:[#allocation2 + $0xb8] sm:$0xff]
    %v69 = vld [vmem:[#allocation2 + $0xc0] sm:$0xff]
    %v70 = vld [vmem:[#allocation2 + $0xc8] sm:$0xff]
    %v71 = vld [vmem:[#allocation2 + $0xd0] sm:$0xff]
    %v72 = vld [vmem:[#allocation2 + $0xd8] sm:$0xff]
    %v73 = vld [vmem:[#allocation2 + $0xe0] sm:$0xff]
    %v74 = vld [vmem:[#allocation2 + $0xe8] sm:$0xff]
    %v75 = vld [vmem:[#allocation2 + $0xf0] sm:$0xff]
    %v76 = vld [vmem:[#allocation2 + $0xf8] sm:$0xff]
    %v77 = vld [vmem:[#allocation2 + $0x100] sm:$0xff]
    %v78 = vld [vmem:[#allocation2 + $0x108] sm:$0xff]
    %v79 = vld [vmem:[#allocation2 + $0x110] sm:$0xff]
    %v80 = vld [vmem:[#allocation2 + $0x118] sm:$0xff]
    %v81 = vld [vmem:[#allocation2 + $0x120] sm:$0xff]
    %v82 = vld [vmem:[#allocation2 + $0x128] sm:$0xff]
    %v83 = vld [vmem:[#allocation2 + $0x130] sm:$0xff]
    %v84 = vld [vmem:[#allocation2 + $0x138] sm:$0xff]
    %v85 = vld [vmem:[#allocation2 + $0x140] sm:$0xff]
    %v86 = vld [vmem:[#allocation2 + $0x148] sm:$0xff]
    %v87 = vld [vmem:[#allocation2 + $0x150] sm:$0xff]
    %v88 = vld [vmem:[#allocation2 + $0x158] sm:$0xff]
    %v89 = vld [vmem:[#allocation2 + $0x160] sm:$0xff]
    %v90 = vld [vmem:[#allocation2 + $0x168] sm:$0xff]
    %v91 = vld [vmem:[#allocation2 + $0x170] sm:$0xff]
    %v92 = vld [vmem:[#allocation2 + $0x178] sm:$0xff]
    %v93 = vld [vmem:[#allocation2 + $0x180] sm:$0xff]
    %v94 = vld [vmem:[#allocation2 + $0x188] sm:$0xff]
    %v95 = vld [vmem:[#allocation2 + $0x190] sm:$0xff]
    %v96 = vld [vmem:[#allocation2 + $0x198] sm:$0xff]
    %v97 = vld [vmem:[#allocation2 + $0x1a0] sm:$0xff]
    %v98 = vld [vmem:[#allocation2 + $0x1a8] sm:$0xff]
    %v99 = vld [vmem:[#allocation2 + $0x1b0] sm:$0xff]
    %v100 = vld [vmem:[#allocation2 + $0x1b8] sm:$0xff]
    %v101 = vld [vmem:[#allocation2 + $0x1c0] sm:$0xff]
    %v102 = vld [vmem:[#allocation2 + $0x1c8] sm:$0xff]
    %v103 = vld [vmem:[#allocation2 + $0x1d0] sm:$0xff]
    %v104 = vld [vmem:[#allocation2 + $0x1d8] sm:$0xff]
    %v105 = vld [vmem:[#allocation2 + $0x1e0] sm:$0xff]
    %v106 = vld [vmem:[#allocation2 + $0x1e8] sm:$0xff]
    %v107 = vld [vmem:[#allocation2 + $0x1f0] sm:$0xff]
    %v108 = vld [vmem:[#allocation2 + $0x1f8] sm:$0xff]
    %v109 = vld [vmem:[%s3] sm:$0x3]
    %v111 = vperm.slane %v109, 0
    %v112 = vperm.slane %v109, 1
    %115 = vmatpush.msra.mxu0 %v75
    %116 = vmatpush.msra.mxu0 %v73
    %117 = vmatpush.msra.mxu0 %v71
    %118 = vmatpush.msra.mxu0 %v69
    %119 = vmatpush.msra.mxu0 %v67
    %120 = vmatpush.msra.mxu0 %v65
    %121 = vmatpush.msra.mxu0 %v63
    %122 = vmatpush.msra.mxu0 %v61
    %123 = vmatpush.msra.mxu0 %v59
    %124 = vmatpush.msra.mxu0 %v57
    %125 = vmatpush.msra.mxu0 %v55
    %126 = vmatpush.msra.mxu0 %v53
    %127 = vmatpush.msra.mxu0 %v51
    %128 = vmatpush.msra.mxu0 %v49
    %129 = vmatpush.msra.mxu0 %v47
    %130 = vmatpush.msra.mxu0 %v45
    %131 = vmatmul.f32.gmra.mxu0 %v43
    %v132 = vpop.f32.mrf.mxu0
    %v133 = vadd.f32 %v111, %v132
    %134 = vdwg.mxu0
    %135 = vmatpush.msra.mxu0 %v107
    %136 = vmatpush.msra.mxu0 %v105
    %137 = vmatpush.msra.mxu0 %v103
    %138 = vmatpush.msra.mxu0 %v101
    %139 = vmatpush.msra.mxu0 %v99
    %140 = vmatpush.msra.mxu0 %v97
    %141 = vmatpush.msra.mxu0 %v95
    %142 = vmatpush.msra.mxu0 %v93
    %143 = vmatpush.msra.mxu0 %v91
    %144 = vmatpush.msra.mxu0 %v89
    %145 = vmatpush.msra.mxu0 %v87
    %146 = vmatpush.msra.mxu0 %v85
    %147 = vmatpush.msra.mxu0 %v83
    %148 = vmatpush.msra.mxu0 %v81
    %149 = vmatpush.msra.mxu0 %v79
    %150 = vmatpush.msra.mxu0 %v77
    %151 = vmatmul.f32.gmra.mxu0 %v44
    %v152 = vpop.f32.mrf.mxu0
    %v153 = vadd.f32 %v133, %v152
    %154 = vdwg.mxu0
    %155 = vmatpush.msra.mxu0 %v76
    %156 = vmatpush.msra.mxu0 %v74
    %157 = vmatpush.msra.mxu0 %v72
    %158 = vmatpush.msra.mxu0 %v70
    %159 = vmatpush.msra.mxu0 %v68
    %160 = vmatpush.msra.mxu0 %v66
    %161 = vmatpush.msra.mxu0 %v64
    %162 = vmatpush.msra.mxu0 %v62
    %163 = vmatpush.msra.mxu0 %v60
    %164 = vmatpush.msra.mxu0 %v58
    %165 = vmatpush.msra.mxu0 %v56
    %166 = vmatpush.msra.mxu0 %v54
    %167 = vmatpush.msra.mxu0 %v52
    %168 = vmatpush.msra.mxu0 %v50
    %169 = vmatpush.msra.mxu0 %v48
    %170 = vmatpush.msra.mxu0 %v46
    %171 = vmatmul.f32.gmra.mxu0 %v43
    %v172 = vpop.f32.mrf.mxu0
    %v173 = vadd.f32 %v112, %v172
    %174 = vdwg.mxu0
    %175 = vmatpush.msra.mxu0 %v108
    %176 = vmatpush.msra.mxu0 %v106
    %177 = vmatpush.msra.mxu0 %v104
    %178 = vmatpush.msra.mxu0 %v102
    %179 = vmatpush.msra.mxu0 %v100
    %180 = vmatpush.msra.mxu0 %v98
    %181 = vmatpush.msra.mxu0 %v96
    %182 = vmatpush.msra.mxu0 %v94
    %183 = vmatpush.msra.mxu0 %v92
    %184 = vmatpush.msra.mxu0 %v90
    %185 = vmatpush.msra.mxu0 %v88
    %186 = vmatpush.msra.mxu0 %v86
    %187 = vmatpush.msra.mxu0 %v84
    %188 = vmatpush.msra.mxu0 %v82
    %189 = vmatpush.msra.mxu0 %v80
    %190 = vmatpush.msra.mxu0 %v78
    %191 = vmatmul.f32.gmra.mxu0 %v44
    %v192 = vpop.f32.mrf.mxu0
    %v193 = vadd.f32 %v173, %v192
    %194 = vdwg.mxu0
    %v195 = vmax.f32 %v153, 0.0
    %v196 = vmax.f32 %v193, 0.0
    %v197 = vld [vmem:[%s1] sm:$0xff]
    %v198 = vld [vmem:[%s4] sm:$0xff]
    %v199 = vld [vmem:[%s4 + $0x8] sm:$0xff]
    %vm200 = vcmask 64512
    %v202 = vsel %vm200, %v197, 0
    %204 = vmatpush.msra.mxu0 0.0
    %205 = vmatpush.msra.mxu0 0.0
    %206 = vmatpush.msra.mxu0 0.0
    %207 = vmatpush.msra.mxu0 0.0
    %208 = vmatpush.msra.mxu0 0.0
    %209 = vmatpush.msra.mxu0 0.0
    %210 = vmatpush.msra.mxu0 0.0
    %211 = vmatpush.msra.mxu0 0.0
    %212 = vmatpush.msra.mxu0 0.0
    %213 = vmatpush.msra.mxu0 0.0
    %214 = vmatpush.msra.mxu0 0.0
    %215 = vmatpush.msra.mxu0 0.0
    %216 = vmatpush.msra.mxu0 0.0
    %217 = vmatpush.msra.mxu0 0.0
    %218 = vmatpush.msra.mxu0 0.0
    %219 = vmatpush.msra.mxu0 %v198
    %220 = vmatmul.f32.gmra.mxu0 %v202
    %v221 = vpop.f32.mrf.mxu0
    %v222 = vadd.f32 0.0, %v221
    %223 = vdwg.mxu0
    %224 = vmatpush.msra.mxu0 0.0
    %225 = vmatpush.msra.mxu0 0.0
    %226 = vmatpush.msra.mxu0 0.0
    %227 = vmatpush.msra.mxu0 0.0
    %228 = vmatpush.msra.mxu0 0.0
    %229 = vmatpush.msra.mxu0 0.0
    %230 = vmatpush.msra.mxu0 0.0
    %231 = vmatpush.msra.mxu0 0.0
    %232 = vmatpush.msra.mxu0 0.0
    %233 = vmatpush.msra.mxu0 0.0
    %234 = vmatpush.msra.mxu0 0.0
    %235 = vmatpush.msra.mxu0 0.0
    %236 = vmatpush.msra.mxu0 0.0
    %237 = vmatpush.msra.mxu0 0.0
    %238 = vmatpush.msra.mxu0 0.0
    %239 = vmatpush.msra.mxu0 %v199
    %240 = vmatmul.f32.gmra.mxu0 %v202
    %v241 = vpop.f32.mrf.mxu0
    %v242 = vadd.f32 0.0, %v241
    %243 = vdwg.mxu0
    %v244 = vmul.f32 %v195, %v222
    %v245 = vmul.f32 %v196, %v242
    %v246 = vmax.f32 %v244, %v245
    %247 = vrot.lane.b32.xlu0 %v246, 64
    %v248 = vpop.permute.xlu0 %247
    %v249 = vlaneseq
    %v250 = vand.u32 %v249, 127
    %v251 = vmax.f32 %v246, %v248
    %252 = vrot.lane.b32.xlu0 %v251, 32
    %v253 = vpop.permute.xlu0 %252
    %v254 = vmax.f32 %v251, %v253
    %v255 = vld [vmem:[%s5] sm:$0xff]
    %v256 = vld [vmem:[%s5 + $0x8] sm:$0xff]
    %v257 = vld [vmem:[%s5 + $0x10] sm:$0xff]
    %v258 = vld [vmem:[%s5 + $0x18] sm:$0xff]
    %v259 = vld [vmem:[%s6] sm:$0x1]
    %v261 = vperm.slane %v259, 0
    %vm263 = vcmask 261120
    %v265 = vsel %vm263, %v254, 0
    %267 = vmatpush.msra.mxu0 0.0
    %268 = vmatpush.msra.mxu0 0.0
    %269 = vmatpush.msra.mxu0 0.0
    %270 = vmatpush.msra.mxu0 0.0
    %271 = vmatpush.msra.mxu0 0.0
    %272 = vmatpush.msra.mxu0 0.0
    %273 = vmatpush.msra.mxu0 0.0
    %274 = vmatpush.msra.mxu0 0.0
    %275 = vmatpush.msra.mxu0 0.0
    %276 = vmatpush.msra.mxu0 0.0
    %277 = vmatpush.msra.mxu0 0.0
    %278 = vmatpush.msra.mxu0 0.0
    %279 = vmatpush.msra.mxu0 %v258
    %280 = vmatpush.msra.mxu0 %v257
    %281 = vmatpush.msra.mxu0 %v256
    %282 = vmatpush.msra.mxu0 %v255
    %283 = vmatmul.f32.gmra.mxu0 %v265
    %v284 = vpop.f32.mrf.mxu0
    %v285 = vadd.f32 %v261, %v284
    %286 = vdwg.mxu0
    %v287 = vmax.f32 %v285, 0.0
    %vm288 = vcmask 195584
    %289 = vst.msk [vmem:[#allocation5] sm:$0xff] %vm288, %v287
    // Predicated region
    $region34: #{tpu_custom_call.1} parent=1 // pred_check
      _
    $region35: #{tpu_custom_call.1} parent=1 // pred_check_branch
      %291 = sbr.rel (0) target = $region37
    $region36: #{tpu_custom_call.1} parent=1 // pred_region
      %293 = vsyncadd [#allocation4], 0
      %s295 = sshll.u32 [#allocation5], 4
      %s296 = int_to_ptr.vmem [resolvable:$true] %s295
      %s297 = sshll.u32 %s7, 4
      %s298 = int_to_ptr.hbm [resolvable:$true] %s297
      %300 = dma.vmem_to_hbm [thread:$0]  %s296, 128, %s298, [#allocation4]
    $region37: #{tpu_custom_call.1} parent=1 // pred_fallthru
      _
    // Predicated region
    $region38: #{tpu_custom_call.1} parent=1 // pred_check
      _
    $region39: #{tpu_custom_call.1} parent=1 // pred_check_branch
      %302 = sbr.rel (0) target = $region41
    $region40: #{tpu_custom_call.1} parent=1 // pred_region
      %304 = dma.done [#allocation4], 128
    $region41: #{tpu_custom_call.1} parent=1 // pred_fallthru
      _
    %305 = vsyncpa [#allocation3], 1
    %306 = vsyncpa [#allocation4], 1

</llo_original>
